<compile_context>
chip_gen: v6e
topology: v6e:2x2x1
jax: 0.10.0
libtpu: 0.0.40
codegen_flags: <defaults>
</compile_context>

<pallas_src>
import jax
import jax.numpy as jnp
from jax.experimental import pallas as pl
from jax.experimental.pallas import tpu as pltpu


def _linear_kernel(x_ref, w_ref, o_ref):
    # x_ref: (tm, d1) tile, w_ref: (d1, tn) weight tile, o_ref: (tm, tn).
    o_ref[...] = jnp.dot(
        x_ref[...], w_ref[...], preferred_element_type=jnp.float32
    ).astype(o_ref.dtype)


def _round_up(x, mult):
    return ((x + mult - 1) // mult) * mult


def _choose_tm(m, d1, itemsize, tm_max):
    # Clamp so the double-buffered x tile stays <= ~8 MiB of VMEM.
    by_vmem = max(8, (8 * 2**20) // (2 * d1 * itemsize))
    tm = min(tm_max, by_vmem)
    # v7x megacore: keep >= 2 M grid steps when there are enough rows.
    if m >= 16:
        tm = min(tm, _round_up((m + 1) // 2, 8))
    if tm >= m:
        return m                       # single full block (block dim == array dim)
    return max(8, (tm // 8) * 8)       # partial-M tiling needs a multiple of 8


def _choose_tn(d1, d2, itemsize):
    # Keep the whole weight VMEM-resident when it is small; otherwise tile N
    # in 256-wide chunks (a multiple of the 256-wide MXU on v6e/v7x).
    if d2 <= 256 or d1 * d2 * itemsize <= 8 * 2**20:
        return d2
    return 256


def message_forward(x1, w_gate1, *, tm=1024, use_bf16_inputs=False):
    """g1 = x1 @ w_gate1.T  (PyTorch nn.Linear(d_model1, d_model2, bias=False)).

    x1:      (batch, seq, d_model1)
    w_gate1: (d_model2, d_model1)   -- PyTorch Linear weight layout
    returns: (batch, seq, d_model2) in x1.dtype
    """
    b, s, d1 = x1.shape
    d2 = w_gate1.shape[0]
    m = b * s
    out_dtype = x1.dtype

    x2d = x1.reshape(m, d1)            # free reshape; no padding, no extra HBM pass
    w_t = w_gate1.T                    # one-time (d2,d1) -> (d1,d2) transpose
    if use_bf16_inputs:
        # TODO(synk): default this on once the accuracy budget allows; halves
        # HBM reads and runs the MXU at native bf16 input width.
        x2d = x2d.astype(jnp.bfloat16)
        w_t = w_t.astype(jnp.bfloat16)

    in_itemsize = jnp.dtype(x2d.dtype).itemsize
    out_itemsize = jnp.dtype(out_dtype).itemsize

    tm_eff = _choose_tm(m, d1, in_itemsize, tm)
    tn = _choose_tn(d1, d2, in_itemsize)
    grid_m = -(-m // tm_eff)
    grid_n = -(-d2 // tn)
    weight_resident = grid_n == 1

    # Single-buffer the grid-invariant weight; an N-tiled weight keeps the
    # default double-buffering so its DMA overlaps compute.
    w_spec_kwargs = {}
    if weight_resident and hasattr(pl, "Buffered"):
        w_spec_kwargs["pipeline_mode"] = pl.Buffered(1)
    w_spec = pl.BlockSpec((d1, tn), lambda i, j: (0, j), **w_spec_kwargs)

    # VMEM footprint of the actual buffers (+ headroom); v5e's default scoped
    # limit is only 16 MiB, so raise it explicitly.
    w_buffers = 1 if weight_resident else 2
    needed = (
        2 * tm_eff * d1 * in_itemsize
        + w_buffers * d1 * tn * in_itemsize
        + 2 * tm_eff * tn * out_itemsize
    )
    vmem_limit = int(min(max(2 * needed + (1 << 20), 32 * 2**20), 64 * 2**20))

    out2d = pl.pallas_call(
        _linear_kernel,
        out_shape=jax.ShapeDtypeStruct((m, d2), out_dtype),
        grid_spec=pltpu.PrefetchScalarGridSpec(
            num_scalar_prefetch=0,
            grid=(grid_m, grid_n),
            in_specs=[
                # x tile marches down the rows; invariant across the N axis so
                # it is not re-fetched per N step.
                pl.BlockSpec((tm_eff, d1), lambda i, j: (i, 0)),
                w_spec,
            ],
            out_specs=pl.BlockSpec((tm_eff, tn), lambda i, j: (i, j)),
        ),
        compiler_params=pltpu.CompilerParams(
            dimension_semantics=("parallel", "parallel"),
            vmem_limit_bytes=vmem_limit,
        ),
        cost_estimate=pl.CostEstimate(
            flops=2 * m * d1 * d2,
            transcendentals=0,
            bytes_accessed=(m * d1 + d1 * d2) * in_itemsize + m * d2 * out_itemsize,
        ),
    )(x2d, w_t)

    return out2d.reshape(b, s, d2)


if __name__ == "__main__":
    # Small shapes consistent with the module's forward.
    batch, seq = 2, 8
    d_model1, d_model2 = 32, 32

    key = jax.random.PRNGKey(0)
    k_x, k_w1, k_w2, k_x2 = jax.random.split(key, 4)

    x1 = jax.random.normal(k_x, (batch, seq, d_model1), dtype=jnp.float32)

    # PyTorch Linear init: uniform(-1/sqrt(fan_in), 1/sqrt(fan_in)).
    bound = float(d_model1) ** -0.5
    w_gate1 = jax.random.uniform(
        k_w1, (d_model2, d_model1), minval=-bound, maxval=bound, dtype=jnp.float32
    )
    # fc_gate2 exists in __init__ but is unused in forward; created for parity.
    w_gate2 = jax.random.uniform(
        k_w2, (d_model2, d_model1), minval=-bound, maxval=bound, dtype=jnp.float32
    )

    # 1) Small shape, exact f32 parity path (resident single-buffered weight,
    #    two M grid steps over 16 rows).
    g1 = message_forward(x1, w_gate1)
    jax.block_until_ready(g1)
    ref = jnp.einsum("bsk,ok->bso", x1, w_gate1)
    assert g1.shape == (batch, seq, d_model2)
    assert jnp.allclose(g1, ref, atol=1e-4, rtol=1e-4)

    # 2) Ragged M: exercises the masked partial edge M block (no host-side
    #    padding or output slicing anywhere).
    xb = jax.random.normal(k_x2, (4, 301, d_model1), dtype=jnp.float32)
    gb = message_forward(xb, w_gate1)
    jax.block_until_ready(gb)
    refb = jnp.einsum("bsk,ok->bso", xb, w_gate1)
    assert gb.shape == (4, 301, d_model2)
    assert jnp.allclose(gb, refb, atol=1e-4, rtol=1e-4)

    # 3) Optional bf16-input path (f32 accumulate, f32 output) — looser tol.
    gc = message_forward(x1, w_gate1, use_bf16_inputs=True)
    jax.block_until_ready(gc)
    assert jnp.allclose(gc, ref, atol=3e-2, rtol=3e-2)

    print("KERNEL_OK")
</pallas_src>

<mosaic_0001>
module attributes {stable_mosaic.version = 11 : i64} {
  func.func @_linear_kernel(%arg0: i32, %arg1: i32, %arg2: memref<8x32xf32, #tpu.memory_space<vmem>>, %arg3: memref<32x32xf32, #tpu.memory_space<vmem>>, %arg4: memref<8x32xf32, #tpu.memory_space<vmem>>) attributes {dimension_semantics = [#tpu.dimension_semantics<parallel>, #tpu.dimension_semantics<parallel>], iteration_bounds = array<i64: 2, 1>, scalar_prefetch = 0 : i64, scratch_operands = 0 : i64, tpu.core_type = #tpu.core_type<tc>, window_params = [{transform_indices = @transform_0, window_bounds = array<i64: 8, 32>}, {pipeline_mode = #tpu.pipeline_mode<synchronous>, transform_indices = @transform_1, window_bounds = array<i64: 32, 32>}, {transform_indices = @transform_2, window_bounds = array<i64: 8, 32>}]} {
    %c0 = arith.constant 0 : index
    %c0_0 = arith.constant 0 : index
    %0 = vector.load %arg2[%c0, %c0_0] : memref<8x32xf32, #tpu.memory_space<vmem>>, vector<8x32xf32>
    %c0_1 = arith.constant 0 : index
    %c0_2 = arith.constant 0 : index
    %1 = vector.load %arg3[%c0_1, %c0_2] : memref<32x32xf32, #tpu.memory_space<vmem>>, vector<32x32xf32>
    %cst = arith.constant dense<0.000000e+00> : vector<8x32xf32>
    %2 = tpu.matmul %0, %1, %cst {dimension_numbers = #tpu.dot_dimension_numbers<[1], [0], [0], [1], [0, 0, 1, 1], [], []>} : vector<8x32xf32>, vector<32x32xf32>, vector<8x32xf32> -> vector<8x32xf32>
    %c0_3 = arith.constant 0 : index
    %c0_4 = arith.constant 0 : index
    %3 = vector.load %arg4[%c0_3, %c0_4] : memref<8x32xf32, #tpu.memory_space<vmem>>, vector<8x32xf32>
    tpu.vector_store %arg4[%c0_3, %c0_4], %2 {strides = array<i32>} : memref<8x32xf32, #tpu.memory_space<vmem>>, vector<8x32xf32>,
    return
  }
  func.func @transform_0(%arg0: i32, %arg1: i32) -> (i32, i32) {
    %c0_i32 = arith.constant 0 : i32
    %c0_i32_0 = arith.constant 0 : i32
    return %arg0, %c0_i32 : i32, i32
  }
  func.func @transform_1(%arg0: i32, %arg1: i32) -> (i32, i32) {
    %c0_i32 = arith.constant 0 : i32
    %c0_i32_0 = arith.constant 0 : i32
    return %c0_i32, %arg1 : i32, i32
  }
  func.func @transform_2(%arg0: i32, %arg1: i32) -> (i32, i32) {
    %c0_i32 = arith.constant 0 : i32
    return %arg0, %arg1 : i32, i32
  }
}

</mosaic_0001>

<llo_original>
// kernel: tpu_custom_call.1
$region0: #{tpu_custom_call.1}
  #allocation0 [shape = 'u32[]', space=smem, size = 0x4, offset = 0x4, fixed_abs, tag = 'smem constant byte address 0x4 - core index']
  #allocation1 [shape = 'u32[144,128]{1,0:T(1,128)}', space=vmem, size = 0x12000, scoped, tag = 'internal scratch']
  %s0 = inlined_call_operand.hbm [shape: f32[16,32], index: 0, kind: input, shape index: {}]
  %s1 = inlined_call_operand.hbm [shape: f32[32,32], index: 1, kind: input, shape index: {}]
  %s2 = inlined_call_operand.hbm [shape: f32[16,32], index: 2, kind: output, shape index: {}]
  %s3 = sld [smem:[#allocation0]]
  $region49: #{tpu_custom_call.1} parent=0
    _
  %s5 = ssub.s32 1, %s3
  %s6 = scalar_select 0, %s5, %s3
  $region1: #{tpu_custom_call.1} parent=0
    #allocation2 [shape = 'u8[8192]{0}', space=vmem, size = 0x2000, scoped, tag = 'input window, operand 0']
    #allocation3 [shape = 's32[2]{0}', space=sflag, size = 0x8, scoped, tag = 'scoped memory for tpu_custom_call.1']
    #allocation4 [shape = 's32[2]{0}', space=sflag, size = 0x8, scoped, tag = 'scoped memory for tpu_custom_call.1']
    #allocation5 [shape = 'u8[16384]{0}', space=vmem, size = 0x4000, scoped, tag = 'input window, operand 1, single buffered']
    #allocation6 [shape = 's32[1]{0}', space=sflag, size = 0x4, scoped, tag = 'scoped memory for tpu_custom_call.1']
    #allocation7 [shape = 'u8[8192]{0}', space=vmem, size = 0x2000, scoped, tag = 'output window, operand 0']
    %7 = vsyncpa [#allocation3], 0
    %s8 = scalar_lea.sflag [#allocation3], 1
    %9 = vsyncpa %s8, 0
    %10 = vsyncpa [#allocation6], 0
    %11 = vsyncpa [#allocation4], 0
    %s12 = scalar_lea.sflag [#allocation4], 1
    %13 = vsyncpa %s12, 0
    loop: start=0, step=1, limit=4
    $region2: #{tpu_custom_call.1} parent=1 // loop_pre_header
      _
    $region3: #{tpu_custom_call.1} parent=1 // loop_header
      %s15 = sphi 0, %s19
      %p16 = scmp.ge.s32.totalorder %s15, 4
      %s22 = sphi 0, %s34
      %s23 = sphi 0, %s30
      %s24 = sphi 0, %s22
      %s25 = sphi 0, %s23
      %s26 = sphi 0, %s24
      %s27 = sphi 0, %s25
      %s37 = sphi 0, %s39
      %s40 = sphi 0, %s37
      %s41 = sphi 0, %s40
      %s57 = sphi 0, %s41
      %s63 = sphi 0, %s65
      %s66 = sphi 0, %s63
      %s67 = sphi 0, %s66
      %s83 = sphi 0, %s67
      %s91 = sphi 0, %s93
      %s94 = sphi 0, %s91
      %s95 = sphi 0, %s94
      %s111 = sphi 0, %s95
    $region4: #{tpu_custom_call.1} parent=1 // loop_header_branch
      %18 = sbr.rel (%p16) target = $region8
    $region5: #{tpu_custom_call.1} parent=1 // loop_body
      %s20 = ssub.s32 %s15, 1
      %s21 = ssub.s32 %s15, 2
      %s28 = sadd.s32 1, %s23
      %p29 = scmp.ge.s32.totalorder %s28, 1
      %s30 = scalar_select %p29, 0, %s28
      %s31 = sadd.s32 1, %s22
      %s32 = scalar_select %p29, %s31, %s22
      %p33 = scmp.ge.s32.totalorder %s32, 2
      %s34 = scalar_select %p33, 0, %s32
      %s35 = ssub.s32 %s22, %s34
      %p36 = scmp.eq.s32.totalorder %s35, 0
      %s38 = sadd.s32 %s37, 1
      %s39 = scalar_select %p36, %s37, %s38
      %p42 = pneg %p36
      %p43 = scmp.eq.s32.totalorder %s15, 1
      %p44 = por %p42, %p43
      %p45 = scmp.ne.s32.totalorder %s37, %s40
      %p46 = scmp.eq.s32.totalorder %s15, 0
      %p47 = por %p45, %p46
      %p48 = scmp.ne.s32.totalorder %s37, %s40
      %p49 = scmp.eq.s32.totalorder %s20, 1
      %p50 = por %p48, %p49
      %p51 = scmp.ne.s32.totalorder %s40, %s41
      %p52 = scmp.eq.s32.totalorder %s20, 0
      %p53 = por %p51, %p52
      %p54 = scmp.ne.s32.totalorder %s40, %s41
      %p55 = scmp.eq.s32.totalorder %s21, 1
      %p56 = por %p54, %p55
      %p58 = scmp.ne.s32.totalorder %s41, %s57
      %p59 = scmp.eq.s32.totalorder %s21, 0
      %p60 = por %p58, %p59
      %s61 = ssub.s32 %s23, %s30
      %p62 = scmp.eq.s32.totalorder %s61, 0
      %s64 = sadd.s32 %s63, 1
      %s65 = scalar_select %p62, %s63, %s64
      %p68 = pneg %p62
      %p69 = scmp.eq.s32.totalorder %s15, 1
      %p70 = por %p68, %p69
      %p71 = scmp.ne.s32.totalorder %s63, %s66
      %p72 = scmp.eq.s32.totalorder %s15, 0
      %p73 = por %p71, %p72
      %p74 = scmp.ne.s32.totalorder %s63, %s66
      %p75 = scmp.eq.s32.totalorder %s20, 1
      %p76 = por %p74, %p75
      %p77 = scmp.ne.s32.totalorder %s66, %s67
      %p78 = scmp.eq.s32.totalorder %s20, 0
      %p79 = por %p77, %p78
      %p80 = scmp.ne.s32.totalorder %s66, %s67
      %p81 = scmp.eq.s32.totalorder %s21, 1
      %p82 = por %p80, %p81
      %p84 = scmp.ne.s32.totalorder %s67, %s83
      %p85 = scmp.eq.s32.totalorder %s21, 0
      %p86 = por %p84, %p85
      %s87 = ssub.s32 %s22, %s34
      %s88 = ssub.s32 %s23, %s30
      %s89 = sor.u32 %s87, %s88
      %p90 = scmp.eq.s32.totalorder %s89, 0
      %s92 = sadd.s32 %s91, 1
      %s93 = scalar_select %p90, %s91, %s92
      %p96 = pneg %p90
      %p97 = scmp.eq.s32.totalorder %s15, 1
      %p98 = por %p96, %p97
      %p99 = scmp.ne.s32.totalorder %s91, %s94
      %p100 = scmp.eq.s32.totalorder %s15, 0
      %p101 = por %p99, %p100
      %p102 = scmp.ne.s32.totalorder %s91, %s94
      %p103 = scmp.eq.s32.totalorder %s20, 1
      %p104 = por %p102, %p103
      %p105 = scmp.ne.s32.totalorder %s94, %s95
      %p106 = scmp.eq.s32.totalorder %s20, 0
      %p107 = por %p105, %p106
      %p108 = scmp.ne.s32.totalorder %s94, %s95
      %p109 = scmp.eq.s32.totalorder %s21, 1
      %p110 = por %p108, %p109
      %p112 = scmp.ne.s32.totalorder %s95, %s111
      %p113 = scmp.eq.s32.totalorder %s21, 0
      %p114 = por %p112, %p113
      %p115 = scmp.le.s32.totalorder 1, %s15
      %p116 = scmp.lt.s32.totalorder %s15, 3
      %p117 = pnand %p115, %p116
      %p118 = pneg %p117
      // Predicated region
      $region9: #{tpu_custom_call.1} parent=5 // pred_check
        _
      $region10: #{tpu_custom_call.1} parent=5 // pred_check_branch
        %120 = sbr.rel (%p117) target = $region12
      $region11: #{tpu_custom_call.1} parent=5 // pred_region
        %s121 = ssub.s32 %s15, 1
        // Predicated region
        $region13: #{tpu_custom_call.1} parent=11 // pred_check
          %p122 = pneg %p79
        $region14: #{tpu_custom_call.1} parent=11 // pred_check_branch
          %124 = sbr.rel (%p122) target = $region16
        $region15: #{tpu_custom_call.1} parent=11 // pred_region
          %s126 = ssub.s32 512, 512
          %127 = vsyncadd [#allocation6], %s126
          %s128 = smul.addr %s25, 128
          %s129 = scalar_lea.hbm %s1, %s128
          %s130 = sshll.u32 [#allocation5], 4
          %s131 = int_to_ptr.vmem [resolvable:$true] %s130
          %136 = dma.hbm_to_vmem [thread:$0]  %s129, 512, %s131, [#allocation6], 128, 128, 8
        $region16: #{tpu_custom_call.1} parent=11 // pred_fallthru
          _
      $region12: #{tpu_custom_call.1} parent=5 // pred_fallthru
        _
      %p137 = scmp.lt.s32.totalorder %s15, 2
      // Predicated region
      $region17: #{tpu_custom_call.1} parent=5 // pred_check
        %p138 = pneg %p137
      $region18: #{tpu_custom_call.1} parent=5 // pred_check_branch
        %140 = sbr.rel (%p138) target = $region20
      $region19: #{tpu_custom_call.1} parent=5 // pred_region
        // Predicated region
        $region21: #{tpu_custom_call.1} parent=19 // pred_check
          %p141 = pneg %p47
        $region22: #{tpu_custom_call.1} parent=19 // pred_check_branch
          %143 = sbr.rel (%p141) target = $region24
        $region23: #{tpu_custom_call.1} parent=19 // pred_region
          %s144 = sand.u32 %s37, 1
          %s145 = scalar_lea.sflag [#allocation3], %s144
          %s146 = sand.u32 %s37, 1
          %s147 = smul.addr %s146, 8
          %s148 = scalar_lea.vmem [#allocation2], %s147
          %s150 = ssub.s32 128, 128
          %151 = vsyncadd %s145, %s150
          %s152 = smul.addr %s22, 128
          %s153 = scalar_lea.hbm %s0, %s152
          %s155 = sshll.u32 %s148, 4
          %s156 = int_to_ptr.vmem [resolvable:$true] %s155
          %158 = dma.hbm_to_vmem [thread:$0]  %s153, 128, %s156, %s145
        $region24: #{tpu_custom_call.1} parent=19 // pred_fallthru
          _
      $region20: #{tpu_custom_call.1} parent=5 // pred_fallthru
        _
      %p159 = scmp.le.s32.totalorder 1, %s15
      %p160 = scmp.lt.s32.totalorder %s15, 3
      %p161 = pnand %p159, %p160
      %p162 = pneg %p161
      // Predicated region
      $region25: #{tpu_custom_call.1} parent=5 // pred_check
        _
      $region26: #{tpu_custom_call.1} parent=5 // pred_check_branch
        %164 = sbr.rel (%p161) target = $region28
      $region27: #{tpu_custom_call.1} parent=5 // pred_region
        %s165 = ssub.s32 %s15, 1
        %s166 = sand.u32 %s40, 1
        %s167 = scalar_lea.sflag [#allocation3], %s166
        %s168 = sand.u32 %s40, 1
        %s169 = smul.addr %s168, 8
        %s170 = scalar_lea.vmem [#allocation2], %s169
        // Predicated region
        $region29: #{tpu_custom_call.1} parent=27 // pred_check
          %p171 = pneg %p53
        $region30: #{tpu_custom_call.1} parent=27 // pred_check_branch
          %173 = sbr.rel (%p171) target = $region32
        $region31: #{tpu_custom_call.1} parent=27 // pred_region
          %174 = dma.done %s167, 128
        $region32: #{tpu_custom_call.1} parent=27 // pred_fallthru
          _
        // Predicated region
        $region33: #{tpu_custom_call.1} parent=27 // pred_check
          %p175 = pneg %p79
        $region34: #{tpu_custom_call.1} parent=27 // pred_check_branch
          %177 = sbr.rel (%p175) target = $region36
        $region35: #{tpu_custom_call.1} parent=27 // pred_region
          %178 = dma.done [#allocation6], 512
        $region36: #{tpu_custom_call.1} parent=27 // pred_fallthru
          _
        %s179 = sand.u32 %s40, 1
        %s180 = scalar_lea.sflag [#allocation3], %s179
        %s181 = sand.u32 %s40, 1
        %s182 = smul.addr %s181, 8
        %s183 = scalar_lea.vmem [#allocation2], %s182
        %p184 = pneg %p53
        %p185 = pneg %p50
        %p186 = pneg %p79
        %p187 = pneg %p76
        %p188 = pneg %p107
        %p189 = pneg %p104
        %s190 = sand.u32 %s94, 1
        %s191 = scalar_lea.sflag [#allocation4], %s190
        %s192 = sand.u32 %s94, 1
        %s193 = smul.addr %s192, 8
        %s194 = scalar_lea.vmem [#allocation7], %s193
        %v195 = vld [vmem:[%s170] sm:$0xff]
        %v196 = vld [vmem:[#allocation5] sm:$0xff]
        %v197 = vld [vmem:[#allocation5 + $0x8] sm:$0xff]
        %v198 = vld [vmem:[#allocation5 + $0x10] sm:$0xff]
        %v199 = vld [vmem:[#allocation5 + $0x18] sm:$0xff]
        %vm200 = vcmask 261120
        %v202 = vsel %vm200, %v195, 0
        %204 = vmatprep.subr.mxu0 0.0
        %205 = vmatpush1.msra.mxu0 0.0
        %206 = vmatprep.subr.mxu0 0.0
        %207 = vmatpush1.msra.mxu0 0.0
        %208 = vmatprep.subr.mxu0 0.0
        %209 = vmatpush1.msra.mxu0 0.0
        %210 = vmatprep.subr.mxu0 0.0
        %211 = vmatpush1.msra.mxu0 0.0
        %212 = vmatprep.subr.mxu0 0.0
        %213 = vmatpush1.msra.mxu0 0.0
        %214 = vmatprep.subr.mxu0 0.0
        %215 = vmatpush1.msra.mxu0 0.0
        %216 = vmatprep.subr.mxu0 0.0
        %217 = vmatpush1.msra.mxu0 0.0
        %218 = vmatprep.subr.mxu0 0.0
        %219 = vmatpush1.msra.mxu0 0.0
        %220 = vmatprep.subr.mxu0 0.0
        %221 = vmatpush1.msra.mxu0 0.0
        %222 = vmatprep.subr.mxu0 0.0
        %223 = vmatpush1.msra.mxu0 0.0
        %224 = vmatprep.subr.mxu0 0.0
        %225 = vmatpush1.msra.mxu0 0.0
        %226 = vmatprep.subr.mxu0 0.0
        %227 = vmatpush1.msra.mxu0 0.0
        %228 = vmatprep.subr.mxu0 0.0
        %229 = vmatpush1.msra.mxu0 %v199
        %230 = vmatprep.subr.mxu0 0.0
        %231 = vmatpush1.msra.mxu0 %v198
        %232 = vmatprep.subr.mxu0 0.0
        %233 = vmatpush1.msra.mxu0 %v197
        %234 = vmatprep.subr.mxu0 0.0
        %235 = vmatpush1.msra.mxu0 %v196
        %236 = vmatprep.subr.mxu0 0.0
        %237 = vmatpush2.msra.mxu0 0.0
        %238 = vmatprep.subr.mxu0 0.0
        %239 = vmatpush2.msra.mxu0 0.0
        %240 = vmatprep.subr.mxu0 0.0
        %241 = vmatpush2.msra.mxu0 0.0
        %242 = vmatprep.subr.mxu0 0.0
        %243 = vmatpush2.msra.mxu0 0.0
        %244 = vmatprep.subr.mxu0 0.0
        %245 = vmatpush2.msra.mxu0 0.0
        %246 = vmatprep.subr.mxu0 0.0
        %247 = vmatpush2.msra.mxu0 0.0
        %248 = vmatprep.subr.mxu0 0.0
        %249 = vmatpush2.msra.mxu0 0.0
        %250 = vmatprep.subr.mxu0 0.0
        %251 = vmatpush2.msra.mxu0 0.0
        %252 = vmatprep.subr.mxu0 0.0
        %253 = vmatpush2.msra.mxu0 0.0
        %254 = vmatprep.subr.mxu0 0.0
        %255 = vmatpush2.msra.mxu0 0.0
        %256 = vmatprep.subr.mxu0 0.0
        %257 = vmatpush2.msra.mxu0 0.0
        %258 = vmatprep.subr.mxu0 0.0
        %259 = vmatpush2.msra.mxu0 0.0
        %260 = vmatprep.subr.mxu0 0.0
        %261 = vmatpush2.msra.mxu0 0.0
        %262 = vmatprep.subr.mxu0 0.0
        %263 = vmatpush2.msra.mxu0 0.0
        %264 = vmatprep.subr.mxu0 0.0
        %265 = vmatpush2.msra.mxu0 0.0
        %266 = vmatprep.subr.mxu0 0.0
        %267 = vmatpush2.msra.mxu0 0.0
        %268 = vmatprep.mubr.f32.mxu0 0.0
        %269 = vmatmul.mubr.f32.gmra.mxu0 %v202
        %v270 = vpop.f32.mrf.mxu0
        %v271 = vadd.f32 0.0, %v270
        %v272 = vpop.f32.mrf.mxu0
        %273 = vdwg.mxu0
        %274 = vst.msk [vmem:[%s194] sm:$0xff] %vm200, %v271
        %s275 = sand.u32 %s94, 1
        %s276 = scalar_lea.sflag [#allocation4], %s275
        %s277 = sand.u32 %s94, 1
        %s278 = smul.addr %s277, 8
        %s279 = scalar_lea.vmem [#allocation7], %s278
        // Predicated region
        $region37: #{tpu_custom_call.1} parent=27 // pred_check
          %p280 = pneg %p104
        $region38: #{tpu_custom_call.1} parent=27 // pred_check_branch
          %282 = sbr.rel (%p280) target = $region40
        $region39: #{tpu_custom_call.1} parent=27 // pred_region
          %s284 = ssub.s32 128, 128
          %285 = vsyncadd %s276, %s284
          %s286 = sadd.s32 %s25, %s24
          %s287 = smul.addr %s286, 128
          %s288 = scalar_lea.hbm %s2, %s287
          %s290 = sshll.u32 %s279, 4
          %s291 = int_to_ptr.vmem [resolvable:$true] %s290
          %293 = dma.vmem_to_hbm [thread:$0]  %s291, 128, %s288, %s276
        $region40: #{tpu_custom_call.1} parent=27 // pred_fallthru
          _
      $region28: #{tpu_custom_call.1} parent=5 // pred_fallthru
        _
      %p294 = scmp.le.s32.totalorder 2, %s15
      // Predicated region
      $region41: #{tpu_custom_call.1} parent=5 // pred_check
        %p295 = pneg %p294
      $region42: #{tpu_custom_call.1} parent=5 // pred_check_branch
        %297 = sbr.rel (%p295) target = $region44
      $region43: #{tpu_custom_call.1} parent=5 // pred_region
        %s298 = ssub.s32 %s15, 2
        // Predicated region
        $region45: #{tpu_custom_call.1} parent=43 // pred_check
          %p299 = pneg %p110
        $region46: #{tpu_custom_call.1} parent=43 // pred_check_branch
          %301 = sbr.rel (%p299) target = $region48
        $region47: #{tpu_custom_call.1} parent=43 // pred_region
          %s302 = sand.u32 %s95, 1
          %s303 = scalar_lea.sflag [#allocation4], %s302
          %s304 = sand.u32 %s95, 1
          %s305 = smul.addr %s304, 8
          %s306 = scalar_lea.vmem [#allocation7], %s305
          %307 = dma.done %s303, 128
        $region48: #{tpu_custom_call.1} parent=43 // pred_fallthru
          _
      $region44: #{tpu_custom_call.1} parent=5 // pred_fallthru
        _
    $region6: #{tpu_custom_call.1} parent=1 // loop_footer
      %s19 = sadd.s32 1, %s15
    $region7: #{tpu_custom_call.1} parent=1 // loop_footer_branch
      %14 = sbr.rel target = $region3
    $region8: #{tpu_custom_call.1} parent=1 // loop_exit
      _
    %308 = vsyncpa [#allocation3], 1
    %s309 = scalar_lea.sflag [#allocation3], 1
    %310 = vsyncpa %s309, 1
    %311 = vsyncpa [#allocation6], 1
    %312 = vsyncpa [#allocation4], 1
    %s313 = scalar_lea.sflag [#allocation4], 1
    %314 = vsyncpa %s313, 1

</llo_original>
